<compile_context>
chip_gen: v7x
topology: tpu7x:2x2x1
jax: 0.10.0
libtpu: 0.0.40
codegen_flags: <defaults>
</compile_context>

<pallas_src>
import jax
import jax.numpy as jnp
from jax.experimental import pallas as pl
from jax.experimental.pallas import tpu as pltpu


def _round_up(x, m):
    return (x + m - 1) // m * m


def rnn_kernel(x_ref, wih_ref, whh_ref, b_ref, wout_ref, bout_ref, o_ref, gates_ref):
    """Fused RNN recurrence + output projection.

    x_ref    : (T*Bp, E)   embedded inputs, time-major rows (row = t*Bp + b)
    wih_ref  : (E, Hp)     input->hidden weights (pre-transposed, zero-padded)
    whh_ref  : (Hp, Hp)    hidden->hidden weights (pre-transposed, zero-padded)
    b_ref    : (1, Hp)     combined bias b_ih + b_hh (zero-padded)
    wout_ref : (Hp, Cp)    output Linear weights (pre-transposed, zero-padded)
    bout_ref : (1, Cp)     output Linear bias (zero-padded)
    o_ref    : (Bp, Cp)    logits slab (lane-dense; sliced to (B, C) outside)
    gates_ref: (T*Bp, Hp)  VMEM scratch: x @ W_ih + b for all timesteps
    """
    Bp = o_ref.shape[0]
    T = x_ref.shape[0] // Bp

    # (1) Hoisted input projection + bias for ALL timesteps: one lane-dense MXU
    #     GEMM; the (1, Hp) bias broadcast happens exactly once, not per step.
    gates_ref[...] = (
        jnp.dot(x_ref[...], wih_ref[...], preferred_element_type=jnp.float32)
        + b_ref[...]
    )

    # (2) Serial recurrence over time, fully unrolled at trace time (T static).
    #     h is carried as a value so the read-after-write chain across
    #     timesteps stays explicit; each gates slice is a static ref view.
    # TODO(synk): for large Hp, hold W_hh resident in MXU weight registers via
    # pltpu.matmul_push_rhs / matmul_acc_lhs instead of jnp.dot per step.
    whh = whh_ref[...]
    # h0 == 0, so the first step is simply tanh(gates[0]).
    h = jnp.tanh(gates_ref[pl.ds(0, Bp), :])
    for t in range(1, T):
        g = gates_ref[pl.ds(t * Bp, Bp), :]
        h = jnp.tanh(g + jnp.dot(h, whh, preferred_element_type=jnp.float32))

    # (3) Final Linear projection on the last-timestep hidden state.
    o_ref[...] = (
        jnp.dot(h, wout_ref[...], preferred_element_type=jnp.float32)
        + bout_ref[...]
    )


def my_rnn_model_forward(token_ids, params):
    """Forward pass equivalent to MyRnnModel.forward(x) with label=None."""
    emb, w_ih, w_hh, b, w_out, b_out = (
        params["emb"],
        params["w_ih"],
        params["w_hh"],
        params["b"],
        params["w_out"],
        params["b_out"],
    )
    B, T = token_ids.shape
    E = emb.shape[1]
    H = w_hh.shape[0]
    C = w_out.shape[1]

    # Lane/sublane-friendly padded sizes.
    Bp = _round_up(max(B, 8), 8)   # >= 8 sublanes
    Hp = _round_up(H, 128)         # lane-dense hidden dim
    Cp = _round_up(C, 128)         # lane-dense logits dim

    # Embedding lookup (wrapper glue) -> time-major, batch-padded, flattened to
    # (T*Bp, E) so the in-kernel gates GEMM is a single well-shaped matmul.
    # TODO(synk): fuse this gather into the kernel (scalar-prefetched row
    # gather) to drop the extra HBM round trip once T/B/E are scaled up.
    xe = jnp.take(emb, token_ids, axis=0)                 # (B, T, E)
    xe = jnp.transpose(xe, (1, 0, 2))                     # (T, B, E)
    xe = jnp.pad(xe, ((0, 0), (0, Bp - B), (0, 0)))       # (T, Bp, E)
    xe = xe.reshape(T * Bp, E).astype(jnp.float32)        # (T*Bp, E)

    # Zero-pad params so padded hidden lanes stay exactly zero through tanh
    # (tanh(0) == 0) and padded output columns stay zero.
    wih_p = jnp.pad(w_ih, ((0, 0), (0, Hp - H)))
    whh_p = jnp.pad(w_hh, ((0, Hp - H), (0, Hp - H)))
    b_p = jnp.pad(b, ((0, 0), (0, Hp - H)))
    wout_p = jnp.pad(w_out, ((0, Hp - H), (0, Cp - C)))
    bout_p = jnp.pad(b_out, ((0, 0), (0, Cp - C)))

    grid_spec = pltpu.PrefetchScalarGridSpec(
        num_scalar_prefetch=0,
        grid=(1,),
        in_specs=[
            pl.BlockSpec((T * Bp, E), lambda i: (0, 0)),
            pl.BlockSpec((E, Hp), lambda i: (0, 0)),
            pl.BlockSpec((Hp, Hp), lambda i: (0, 0)),
            pl.BlockSpec((1, Hp), lambda i: (0, 0)),
            pl.BlockSpec((Hp, Cp), lambda i: (0, 0)),
            pl.BlockSpec((1, Cp), lambda i: (0, 0)),
        ],
        out_specs=pl.BlockSpec((Bp, Cp), lambda i: (0, 0)),
        scratch_shapes=[pltpu.VMEM((T * Bp, Hp), jnp.float32)],
    )

    logits_padded = pl.pallas_call(
        rnn_kernel,
        out_shape=jax.ShapeDtypeStruct((Bp, Cp), jnp.float32),
        grid_spec=grid_spec,
        compiler_params=pltpu.CompilerParams(
            dimension_semantics=("arbitrary",),
        ),
    )(xe, wih_p, whh_p, b_p, wout_p, bout_p)

    return logits_padded[:B, :C]


def init_params(key, vocab_size, embedding_dim, hidden_dim, num_classes):
    """Deterministic synthetic parameter init (PyTorch-like uniform scales)."""
    k = jax.random.split(key, 7)
    bound_rnn = 1.0 / jnp.sqrt(hidden_dim)
    bound_lin = 1.0 / jnp.sqrt(hidden_dim)
    emb = jax.random.normal(k[0], (vocab_size, embedding_dim), jnp.float32)
    # PyTorch stores weight_ih as (H, E) and weight_hh as (H, H); we pre-transpose.
    w_ih = jax.random.uniform(k[1], (embedding_dim, hidden_dim), jnp.float32,
                              -bound_rnn, bound_rnn)
    w_hh = jax.random.uniform(k[2], (hidden_dim, hidden_dim), jnp.float32,
                              -bound_rnn, bound_rnn)
    b_ih = jax.random.uniform(k[3], (hidden_dim,), jnp.float32, -bound_rnn, bound_rnn)
    b_hh = jax.random.uniform(k[4], (hidden_dim,), jnp.float32, -bound_rnn, bound_rnn)
    # PyTorch Linear stores weight as (C, H); we pre-transpose to (H, C).
    w_out = jax.random.uniform(k[5], (hidden_dim, num_classes), jnp.float32,
                               -bound_lin, bound_lin)
    b_out = jax.random.uniform(k[6], (num_classes,), jnp.float32,
                               -bound_lin, bound_lin)
    return {
        "emb": emb,
        "w_ih": w_ih,
        "w_hh": w_hh,
        "b": (b_ih + b_hh).reshape(1, hidden_dim),
        "w_out": w_out,
        "b_out": b_out.reshape(1, num_classes),
    }


def reference_forward(token_ids, params):
    """Pure-JAX reference matching the PyTorch semantics (label=None path)."""
    xe = jnp.take(params["emb"], token_ids, axis=0)  # (B, T, E)
    B, T, E = xe.shape
    H = params["w_hh"].shape[0]
    h = jnp.zeros((B, H), jnp.float32)
    for t in range(T):
        h = jnp.tanh(xe[:, t, :] @ params["w_ih"] + h @ params["w_hh"] + params["b"])
    return h @ params["w_out"] + params["b_out"]


if __name__ == "__main__":
    vocab_size, embedding_dim, hidden_dim, num_classes = 50, 32, 32, 4
    B, T = 2, 8

    key = jax.random.PRNGKey(0)
    k_ids, k_params = jax.random.split(key)
    params = init_params(k_params, vocab_size, embedding_dim, hidden_dim, num_classes)
    token_ids = jax.random.randint(k_ids, (B, T), 0, vocab_size, dtype=jnp.int32)

    # TODO(synk): CrossEntropyLoss branch (forward with label != None) not
    # implemented; this kernel reproduces the label=None logits path.
    logits = my_rnn_model_forward(token_ids, params)
    logits = jax.block_until_ready(logits)

    ref = reference_forward(token_ids, params)
    assert logits.shape == (B, num_classes)
    assert jnp.allclose(logits, ref, atol=1e-4, rtol=1e-4)

    print("KERNEL_OK")
</pallas_src>

<mosaic_0001>
module attributes {stable_mosaic.version = 11 : i64} {
  func.func @rnn_kernel(%arg0: i32, %arg1: memref<64x32xf32, #tpu.memory_space<vmem>>, %arg2: memref<32x128xf32, #tpu.memory_space<vmem>>, %arg3: memref<128x128xf32, #tpu.memory_space<vmem>>, %arg4: memref<1x128xf32, #tpu.memory_space<vmem>>, %arg5: memref<128x128xf32, #tpu.memory_space<vmem>>, %arg6: memref<1x128xf32, #tpu.memory_space<vmem>>, %arg7: memref<8x128xf32, #tpu.memory_space<vmem>>, %arg8: memref<64x128xf32, #tpu.memory_space<vmem>>) attributes {dimension_semantics = [#tpu.dimension_semantics<arbitrary>], iteration_bounds = array<i64: 1>, scalar_prefetch = 0 : i64, scratch_operands = 1 : i64, tpu.core_type = #tpu.core_type<tc>, window_params = [{pipeline_mode = #tpu.pipeline_mode<synchronous>, transform_indices = @transform_0, window_bounds = array<i64: 64, 32>}, {pipeline_mode = #tpu.pipeline_mode<synchronous>, transform_indices = @transform_1, window_bounds = array<i64: 32, 128>}, {pipeline_mode = #tpu.pipeline_mode<synchronous>, transform_indices = @transform_2, window_bounds = array<i64: 128, 128>}, {pipeline_mode = #tpu.pipeline_mode<synchronous>, transform_indices = @transform_3, window_bounds = array<i64: 1, 128>}, {pipeline_mode = #tpu.pipeline_mode<synchronous>, transform_indices = @transform_4, window_bounds = array<i64: 128, 128>}, {pipeline_mode = #tpu.pipeline_mode<synchronous>, transform_indices = @transform_5, window_bounds = array<i64: 1, 128>}, {pipeline_mode = #tpu.pipeline_mode<synchronous>, transform_indices = @transform_6, window_bounds = array<i64: 8, 128>}]} {
    %c0 = arith.constant 0 : index
    %c0_0 = arith.constant 0 : index
    %0 = vector.load %arg1[%c0, %c0_0] : memref<64x32xf32, #tpu.memory_space<vmem>>, vector<64x32xf32>
    %c0_1 = arith.constant 0 : index
    %c0_2 = arith.constant 0 : index
    %1 = vector.load %arg2[%c0_1, %c0_2] : memref<32x128xf32, #tpu.memory_space<vmem>>, vector<32x128xf32>
    %cst = arith.constant dense<0.000000e+00> : vector<64x128xf32>
    %2 = tpu.matmul %0, %1, %cst {dimension_numbers = #tpu.dot_dimension_numbers<[1], [0], [0], [1], [0, 0, 1, 1], [], []>} : vector<64x32xf32>, vector<32x128xf32>, vector<64x128xf32> -> vector<64x128xf32>
    %c0_3 = arith.constant 0 : index
    %c0_4 = arith.constant 0 : index
    %3 = vector.load %arg4[%c0_3, %c0_4] : memref<1x128xf32, #tpu.memory_space<vmem>>, vector<1x128xf32>
    %4 = vector.broadcast %3 : vector<1x128xf32> to vector<64x128xf32>
    %5 = arith.addf %2, %4 : vector<64x128xf32>
    %c0_5 = arith.constant 0 : index
    %c0_6 = arith.constant 0 : index
    %6 = vector.load %arg8[%c0_5, %c0_6] : memref<64x128xf32, #tpu.memory_space<vmem>>, vector<64x128xf32>
    tpu.vector_store %arg8[%c0_5, %c0_6], %5 {strides = array<i32>} : memref<64x128xf32, #tpu.memory_space<vmem>>, vector<64x128xf32>,
    %c0_7 = arith.constant 0 : index
    %c0_8 = arith.constant 0 : index
    %7 = vector.load %arg3[%c0_7, %c0_8] : memref<128x128xf32, #tpu.memory_space<vmem>>, vector<128x128xf32>
    %c0_9 = arith.constant 0 : index
    %c0_10 = arith.constant 0 : index
    %8 = vector.load %arg8[%c0_9, %c0_10] : memref<64x128xf32, #tpu.memory_space<vmem>>, vector<8x128xf32>
    %9 = math.tanh %8 : vector<8x128xf32>
    %c8 = arith.constant 8 : index
    %c0_11 = arith.constant 0 : index
    %10 = vector.load %arg8[%c8, %c0_11] : memref<64x128xf32, #tpu.memory_space<vmem>>, vector<8x128xf32>
    %cst_12 = arith.constant dense<0.000000e+00> : vector<8x128xf32>
    %11 = tpu.matmul %9, %7, %cst_12 {dimension_numbers = #tpu.dot_dimension_numbers<[1], [0], [0], [1], [0, 0, 1, 1], [], []>} : vector<8x128xf32>, vector<128x128xf32>, vector<8x128xf32> -> vector<8x128xf32>
    %12 = arith.addf %10, %11 : vector<8x128xf32>
    %13 = math.tanh %12 : vector<8x128xf32>
    %c16 = arith.constant 16 : index
    %c0_13 = arith.constant 0 : index
    %14 = vector.load %arg8[%c16, %c0_13] : memref<64x128xf32, #tpu.memory_space<vmem>>, vector<8x128xf32>
    %cst_14 = arith.constant dense<0.000000e+00> : vector<8x128xf32>
    %15 = tpu.matmul %13, %7, %cst_14 {dimension_numbers = #tpu.dot_dimension_numbers<[1], [0], [0], [1], [0, 0, 1, 1], [], []>} : vector<8x128xf32>, vector<128x128xf32>, vector<8x128xf32> -> vector<8x128xf32>
    %16 = arith.addf %14, %15 : vector<8x128xf32>
    %17 = math.tanh %16 : vector<8x128xf32>
    %c24 = arith.constant 24 : index
    %c0_15 = arith.constant 0 : index
    %18 = vector.load %arg8[%c24, %c0_15] : memref<64x128xf32, #tpu.memory_space<vmem>>, vector<8x128xf32>
    %cst_16 = arith.constant dense<0.000000e+00> : vector<8x128xf32>
    %19 = tpu.matmul %17, %7, %cst_16 {dimension_numbers = #tpu.dot_dimension_numbers<[1], [0], [0], [1], [0, 0, 1, 1], [], []>} : vector<8x128xf32>, vector<128x128xf32>, vector<8x128xf32> -> vector<8x128xf32>
    %20 = arith.addf %18, %19 : vector<8x128xf32>
    %21 = math.tanh %20 : vector<8x128xf32>
    %c32 = arith.constant 32 : index
    %c0_17 = arith.constant 0 : index
    %22 = vector.load %arg8[%c32, %c0_17] : memref<64x128xf32, #tpu.memory_space<vmem>>, vector<8x128xf32>
    %cst_18 = arith.constant dense<0.000000e+00> : vector<8x128xf32>
    %23 = tpu.matmul %21, %7, %cst_18 {dimension_numbers = #tpu.dot_dimension_numbers<[1], [0], [0], [1], [0, 0, 1, 1], [], []>} : vector<8x128xf32>, vector<128x128xf32>, vector<8x128xf32> -> vector<8x128xf32>
    %24 = arith.addf %22, %23 : vector<8x128xf32>
    %25 = math.tanh %24 : vector<8x128xf32>
    %c40 = arith.constant 40 : index
    %c0_19 = arith.constant 0 : index
    %26 = vector.load %arg8[%c40, %c0_19] : memref<64x128xf32, #tpu.memory_space<vmem>>, vector<8x128xf32>
    %cst_20 = arith.constant dense<0.000000e+00> : vector<8x128xf32>
    %27 = tpu.matmul %25, %7, %cst_20 {dimension_numbers = #tpu.dot_dimension_numbers<[1], [0], [0], [1], [0, 0, 1, 1], [], []>} : vector<8x128xf32>, vector<128x128xf32>, vector<8x128xf32> -> vector<8x128xf32>
    %28 = arith.addf %26, %27 : vector<8x128xf32>
    %29 = math.tanh %28 : vector<8x128xf32>
    %c48 = arith.constant 48 : index
    %c0_21 = arith.constant 0 : index
    %30 = vector.load %arg8[%c48, %c0_21] : memref<64x128xf32, #tpu.memory_space<vmem>>, vector<8x128xf32>
    %cst_22 = arith.constant dense<0.000000e+00> : vector<8x128xf32>
    %31 = tpu.matmul %29, %7, %cst_22 {dimension_numbers = #tpu.dot_dimension_numbers<[1], [0], [0], [1], [0, 0, 1, 1], [], []>} : vector<8x128xf32>, vector<128x128xf32>, vector<8x128xf32> -> vector<8x128xf32>
    %32 = arith.addf %30, %31 : vector<8x128xf32>
    %33 = math.tanh %32 : vector<8x128xf32>
    %c56 = arith.constant 56 : index
    %c0_23 = arith.constant 0 : index
    %34 = vector.load %arg8[%c56, %c0_23] : memref<64x128xf32, #tpu.memory_space<vmem>>, vector<8x128xf32>
    %cst_24 = arith.constant dense<0.000000e+00> : vector<8x128xf32>
    %35 = tpu.matmul %33, %7, %cst_24 {dimension_numbers = #tpu.dot_dimension_numbers<[1], [0], [0], [1], [0, 0, 1, 1], [], []>} : vector<8x128xf32>, vector<128x128xf32>, vector<8x128xf32> -> vector<8x128xf32>
    %36 = arith.addf %34, %35 : vector<8x128xf32>
    %37 = math.tanh %36 : vector<8x128xf32>
    %c0_25 = arith.constant 0 : index
    %c0_26 = arith.constant 0 : index
    %38 = vector.load %arg5[%c0_25, %c0_26] : memref<128x128xf32, #tpu.memory_space<vmem>>, vector<128x128xf32>
    %cst_27 = arith.constant dense<0.000000e+00> : vector<8x128xf32>
    %39 = tpu.matmul %37, %38, %cst_27 {dimension_numbers = #tpu.dot_dimension_numbers<[1], [0], [0], [1], [0, 0, 1, 1], [], []>} : vector<8x128xf32>, vector<128x128xf32>, vector<8x128xf32> -> vector<8x128xf32>
    %c0_28 = arith.constant 0 : index
    %c0_29 = arith.constant 0 : index
    %40 = vector.load %arg6[%c0_28, %c0_29] : memref<1x128xf32, #tpu.memory_space<vmem>>, vector<1x128xf32>
    %41 = vector.broadcast %40 : vector<1x128xf32> to vector<8x128xf32>
    %42 = arith.addf %39, %41 : vector<8x128xf32>
    %c0_30 = arith.constant 0 : index
    %c0_31 = arith.constant 0 : index
    %43 = vector.load %arg7[%c0_30, %c0_31] : memref<8x128xf32, #tpu.memory_space<vmem>>, vector<8x128xf32>
    tpu.vector_store %arg7[%c0_30, %c0_31], %42 {strides = array<i32>} : memref<8x128xf32, #tpu.memory_space<vmem>>, vector<8x128xf32>,
    return
  }
  func.func @transform_0(%arg0: i32) -> (i32, i32) {
    %c0_i32 = arith.constant 0 : i32
    %c0_i32_0 = arith.constant 0 : i32
    %c0_i32_1 = arith.constant 0 : i32
    return %c0_i32, %c0_i32_0 : i32, i32
  }
  func.func @transform_1(%arg0: i32) -> (i32, i32) {
    %c0_i32 = arith.constant 0 : i32
    %c0_i32_0 = arith.constant 0 : i32
    %c0_i32_1 = arith.constant 0 : i32
    return %c0_i32, %c0_i32_0 : i32, i32
  }
  func.func @transform_2(%arg0: i32) -> (i32, i32) {
    %c0_i32 = arith.constant 0 : i32
    %c0_i32_0 = arith.constant 0 : i32
    %c0_i32_1 = arith.constant 0 : i32
    return %c0_i32, %c0_i32_0 : i32, i32
  }
  func.func @transform_3(%arg0: i32) -> (i32, i32) {
    %c0_i32 = arith.constant 0 : i32
    %c0_i32_0 = arith.constant 0 : i32
    %c0_i32_1 = arith.constant 0 : i32
    return %c0_i32, %c0_i32_0 : i32, i32
  }
  func.func @transform_4(%arg0: i32) -> (i32, i32) {
    %c0_i32 = arith.constant 0 : i32
    %c0_i32_0 = arith.constant 0 : i32
    %c0_i32_1 = arith.constant 0 : i32
    return %c0_i32, %c0_i32_0 : i32, i32
  }
  func.func @transform_5(%arg0: i32) -> (i32, i32) {
    %c0_i32 = arith.constant 0 : i32
    %c0_i32_0 = arith.constant 0 : i32
    %c0_i32_1 = arith.constant 0 : i32
    return %c0_i32, %c0_i32_0 : i32, i32
  }
  func.func @transform_6(%arg0: i32) -> (i32, i32) {
    %c0_i32 = arith.constant 0 : i32
    %c0_i32_0 = arith.constant 0 : i32
    %c0_i32_1 = arith.constant 0 : i32
    return %c0_i32, %c0_i32_0 : i32, i32
  }
}

</mosaic_0001>

<llo_original>
// kernel: tpu_custom_call.1
$region0: #{tpu_custom_call.1}
  #allocation0 [shape = 'u32[]', space=smem, size = 0x4, offset = 0x4, fixed_abs, tag = 'smem constant byte address 0x4 - core index']
  #allocation1 [shape = 'u32[144,128]{1,0:T(1,128)}', space=vmem, size = 0x12000, scoped, tag = 'internal scratch']
  #allocation2 [shape = 'f32[64,128]{1,0:T(8,128)}', space=vmem, size = 0x8000, scoped, tag = 'scratch operand']
  %s0 = inlined_call_operand.vmem [shape: f32[64,32], index: 0, kind: input, shape index: {}]
  %s1 = inlined_call_operand.vmem [shape: f32[32,128], index: 1, kind: input, shape index: {}]
  %s2 = inlined_call_operand.hbm [shape: f32[128,128], index: 2, kind: input, shape index: {}]
  %s3 = inlined_call_operand.vmem [shape: f32[1,128], index: 3, kind: input, shape index: {}]
  %s4 = inlined_call_operand.hbm [shape: f32[128,128], index: 4, kind: input, shape index: {}]
  %s5 = inlined_call_operand.vmem [shape: f32[1,128], index: 5, kind: input, shape index: {}]
  %s6 = inlined_call_operand.hbm [shape: f32[8,128], index: 6, kind: output, shape index: {}]
  %s7 = sld [smem:[#allocation0]]
  $region42: #{tpu_custom_call.1} parent=0
    _
  %s9 = ssub.s32 1, %s7
  %s10 = scalar_select 0, %s9, %s7
  $region1: #{tpu_custom_call.1} parent=0
    #allocation3 [shape = 'u8[65536]{0}', space=vmem, size = 0x10000, scoped, tag = 'input window, operand 2, single buffered']
    #allocation4 [shape = 's32[1]{0}', space=sflag, size = 0x4, scoped, tag = 'scoped memory for tpu_custom_call.1']
    #allocation5 [shape = 's32[1]{0}', space=sflag, size = 0x4, scoped, tag = 'scoped memory for tpu_custom_call.1']
    #allocation6 [shape = 'u8[65536]{0}', space=vmem, size = 0x10000, scoped, tag = 'input window, operand 4, single buffered']
    #allocation7 [shape = 's32[1]{0}', space=sflag, size = 0x4, scoped, tag = 'scoped memory for tpu_custom_call.1']
    #allocation8 [shape = 'u8[4096]{0}', space=vmem, size = 0x1000, scoped, tag = 'output window, operand 0, single buffered']
    %11 = vsyncpa [#allocation4], 0
    %12 = vsyncpa [#allocation7], 0
    %13 = vsyncpa [#allocation5], 0
    // Predicated region
    $region2: #{tpu_custom_call.1} parent=1 // pred_check
      _
    $region3: #{tpu_custom_call.1} parent=1 // pred_check_branch
      %15 = sbr.rel (0) target = $region5
    $region4: #{tpu_custom_call.1} parent=1 // pred_region
      _
    $region5: #{tpu_custom_call.1} parent=1 // pred_fallthru
      _
    // Predicated region
    $region6: #{tpu_custom_call.1} parent=1 // pred_check
      _
    $region7: #{tpu_custom_call.1} parent=1 // pred_check_branch
      %17 = sbr.rel (0) target = $region9
    $region8: #{tpu_custom_call.1} parent=1 // pred_region
      _
    $region9: #{tpu_custom_call.1} parent=1 // pred_fallthru
      _
    // Predicated region
    $region10: #{tpu_custom_call.1} parent=1 // pred_check
      _
    $region11: #{tpu_custom_call.1} parent=1 // pred_check_branch
      %19 = sbr.rel (0) target = $region13
    $region12: #{tpu_custom_call.1} parent=1 // pred_region
      %s21 = ssub.s32 2048, 2048
      %22 = vsyncadd [#allocation4], %s21
      %s23 = sshll.u32 [#allocation3], 4
      %s24 = int_to_ptr.vmem [resolvable:$true] %s23
      %29 = dma.hbm_to_vmem [thread:$0]  %s2, 2048, %s24, [#allocation4], 128, 128, 8
    $region13: #{tpu_custom_call.1} parent=1 // pred_fallthru
      _
    // Predicated region
    $region14: #{tpu_custom_call.1} parent=1 // pred_check
      _
    $region15: #{tpu_custom_call.1} parent=1 // pred_check_branch
      %31 = sbr.rel (0) target = $region17
    $region16: #{tpu_custom_call.1} parent=1 // pred_region
      _
    $region17: #{tpu_custom_call.1} parent=1 // pred_fallthru
      _
    // Predicated region
    $region18: #{tpu_custom_call.1} parent=1 // pred_check
      _
    $region19: #{tpu_custom_call.1} parent=1 // pred_check_branch
      %33 = sbr.rel (0) target = $region21
    $region20: #{tpu_custom_call.1} parent=1 // pred_region
      %s35 = ssub.s32 2048, 2048
      %36 = vsyncadd [#allocation7], %s35
      %s37 = sshll.u32 [#allocation6], 4
      %s38 = int_to_ptr.vmem [resolvable:$true] %s37
      %43 = dma.hbm_to_vmem [thread:$0]  %s4, 2048, %s38, [#allocation7], 128, 128, 8
    $region21: #{tpu_custom_call.1} parent=1 // pred_fallthru
      _
    // Predicated region
    $region22: #{tpu_custom_call.1} parent=1 // pred_check
      _
    $region23: #{tpu_custom_call.1} parent=1 // pred_check_branch
      %45 = sbr.rel (0) target = $region25
    $region24: #{tpu_custom_call.1} parent=1 // pred_region
      _
    $region25: #{tpu_custom_call.1} parent=1 // pred_fallthru
      _
    // Predicated region
    $region26: #{tpu_custom_call.1} parent=1 // pred_check
      _
    $region27: #{tpu_custom_call.1} parent=1 // pred_check_branch
      %47 = sbr.rel (0) target = $region29
    $region28: #{tpu_custom_call.1} parent=1 // pred_region
      %48 = dma.done [#allocation4], 2048
    $region29: #{tpu_custom_call.1} parent=1 // pred_fallthru
      _
    // Predicated region
    $region30: #{tpu_custom_call.1} parent=1 // pred_check
      _
    $region31: #{tpu_custom_call.1} parent=1 // pred_check_branch
      %50 = sbr.rel (0) target = $region33
    $region32: #{tpu_custom_call.1} parent=1 // pred_region
      %51 = dma.done [#allocation7], 2048
    $region33: #{tpu_custom_call.1} parent=1 // pred_fallthru
      _
    %v52 = vld [vmem:[%s0] sm:$0xff]
    %v53 = vld [vmem:[%s0 + $0x8] sm:$0xff]
    %v54 = vld [vmem:[%s0 + $0x10] sm:$0xff]
    %v55 = vld [vmem:[%s0 + $0x18] sm:$0xff]
    %v56 = vld [vmem:[%s0 + $0x20] sm:$0xff]
    %v57 = vld [vmem:[%s0 + $0x28] sm:$0xff]
    %v58 = vld [vmem:[%s0 + $0x30] sm:$0xff]
    %v59 = vld [vmem:[%s0 + $0x38] sm:$0xff]
    %v60 = vld [vmem:[%s1] sm:$0xff]
    %v61 = vld [vmem:[%s1 + $0x8] sm:$0xff]
    %v62 = vld [vmem:[%s1 + $0x10] sm:$0xff]
    %v63 = vld [vmem:[%s1 + $0x18] sm:$0xff]
    %v64 = vld [vmem:[%s3] sm:$0x1]
    %v66 = vlaneseq
    %v67 = vshrl.u32 %v66, 7
    %v68 = vsub.s32 0, %v67
    %v69 = vrot.slane %v64, %v68
    %vm71 = vcmask 261120
    %v73 = vsel %vm71, %v52, 0
    %v76 = vsel %vm71, %v53, 0
    %v79 = vsel %vm71, %v54, 0
    %v82 = vsel %vm71, %v55, 0
    %v85 = vsel %vm71, %v56, 0
    %v88 = vsel %vm71, %v57, 0
    %v91 = vsel %vm71, %v58, 0
    %v94 = vsel %vm71, %v59, 0
    %96 = vmatprep.subr.mxu0 0.0
    %97 = vmatpush1.msra.mxu0 %v60
    %98 = vmatprep.subr.mxu0 0.0
    %99 = vmatpush1.msra.mxu0 %v61
    %100 = vmatprep.subr.mxu0 0.0
    %101 = vmatpush1.msra.mxu0 %v62
    %102 = vmatprep.subr.mxu0 0.0
    %103 = vmatpush1.msra.mxu0 %v63
    %104 = vmatprep.subr.mxu0 0.0
    %105 = vmatpush1.msra.mxu0 0.0
    %106 = vmatprep.subr.mxu0 0.0
    %107 = vmatpush1.msra.mxu0 0.0
    %108 = vmatprep.subr.mxu0 0.0
    %109 = vmatpush1.msra.mxu0 0.0
    %110 = vmatprep.subr.mxu0 0.0
    %111 = vmatpush1.msra.mxu0 0.0
    %112 = vmatprep.subr.mxu0 0.0
    %113 = vmatpush1.msra.mxu0 0.0
    %114 = vmatprep.subr.mxu0 0.0
    %115 = vmatpush1.msra.mxu0 0.0
    %116 = vmatprep.subr.mxu0 0.0
    %117 = vmatpush1.msra.mxu0 0.0
    %118 = vmatprep.subr.mxu0 0.0
    %119 = vmatpush1.msra.mxu0 0.0
    %120 = vmatprep.subr.mxu0 0.0
    %121 = vmatpush1.msra.mxu0 0.0
    %122 = vmatprep.subr.mxu0 0.0
    %123 = vmatpush1.msra.mxu0 0.0
    %124 = vmatprep.subr.mxu0 0.0
    %125 = vmatpush1.msra.mxu0 0.0
    %126 = vmatprep.subr.mxu0 0.0
    %127 = vmatpush1.msra.mxu0 0.0
    %128 = vmatprep.subr.mxu0 0.0
    %129 = vmatpush1.msra.mxu0 0.0
    %130 = vmatprep.subr.mxu0 0.0
    %131 = vmatpush1.msra.mxu0 0.0
    %132 = vmatprep.subr.mxu0 0.0
    %133 = vmatpush1.msra.mxu0 0.0
    %134 = vmatprep.subr.mxu0 0.0
    %135 = vmatpush1.msra.mxu0 0.0
    %136 = vmatprep.subr.mxu0 0.0
    %137 = vmatpush1.msra.mxu0 0.0
    %138 = vmatprep.subr.mxu0 0.0
    %139 = vmatpush1.msra.mxu0 0.0
    %140 = vmatprep.subr.mxu0 0.0
    %141 = vmatpush1.msra.mxu0 0.0
    %142 = vmatprep.subr.mxu0 0.0
    %143 = vmatpush1.msra.mxu0 0.0
    %144 = vmatprep.subr.mxu0 0.0
    %145 = vmatpush1.msra.mxu0 0.0
    %146 = vmatprep.subr.mxu0 0.0
    %147 = vmatpush1.msra.mxu0 0.0
    %148 = vmatprep.subr.mxu0 0.0
    %149 = vmatpush1.msra.mxu0 0.0
    %150 = vmatprep.subr.mxu0 0.0
    %151 = vmatpush1.msra.mxu0 0.0
    %152 = vmatprep.subr.mxu0 0.0
    %153 = vmatpush1.msra.mxu0 0.0
    %154 = vmatprep.subr.mxu0 0.0
    %155 = vmatpush1.msra.mxu0 0.0
    %156 = vmatprep.subr.mxu0 0.0
    %157 = vmatpush1.msra.mxu0 0.0
    %158 = vmatprep.subr.mxu0 0.0
    %159 = vmatpush1.msra.mxu0 0.0
    %160 = vmatprep.mubr.f32.mxu0 0.0
    %161 = vmatmul.mubr.f32.gmra.mrb[0].mxu0 %v73
    %v162 = vpop.f32.mrb[0].mxu0
    %v163 = vadd.f32 %v69, %v162
    %v164 = vpop.f32.mrb[0].mxu0
    %165 = vmatprep.mubr.f32.mxu0 0.0
    %166 = vmatmul.mubr.f32.gmra.mrb[0].mxu0 %v76
    %v167 = vpop.f32.mrb[0].mxu0
    %v168 = vadd.f32 %v69, %v167
    %v169 = vpop.f32.mrb[0].mxu0
    %170 = vmatprep.mubr.f32.mxu0 0.0
    %171 = vmatmul.mubr.f32.gmra.mrb[0].mxu0 %v79
    %v172 = vpop.f32.mrb[0].mxu0
    %v173 = vadd.f32 %v69, %v172
    %v174 = vpop.f32.mrb[0].mxu0
    %175 = vmatprep.mubr.f32.mxu0 0.0
    %176 = vmatmul.mubr.f32.gmra.mrb[0].mxu0 %v82
    %v177 = vpop.f32.mrb[0].mxu0
    %v178 = vadd.f32 %v69, %v177
    %v179 = vpop.f32.mrb[0].mxu0
    %180 = vmatprep.mubr.f32.mxu0 0.0
    %181 = vmatmul.mubr.f32.gmra.mrb[0].mxu0 %v85
    %v182 = vpop.f32.mrb[0].mxu0
    %v183 = vadd.f32 %v69, %v182
    %v184 = vpop.f32.mrb[0].mxu0
    %185 = vmatprep.mubr.f32.mxu0 0.0
    %186 = vmatmul.mubr.f32.gmra.mrb[0].mxu0 %v88
    %v187 = vpop.f32.mrb[0].mxu0
    %v188 = vadd.f32 %v69, %v187
    %v189 = vpop.f32.mrb[0].mxu0
    %190 = vmatprep.mubr.f32.mxu0 0.0
    %191 = vmatmul.mubr.f32.gmra.mrb[0].mxu0 %v91
    %v192 = vpop.f32.mrb[0].mxu0
    %v193 = vadd.f32 %v69, %v192
    %v194 = vpop.f32.mrb[0].mxu0
    %195 = vmatprep.mubr.f32.mxu0 0.0
    %196 = vmatmul.mubr.f32.gmra.mrb[0].mxu0 %v94
    %v197 = vpop.f32.mrb[0].mxu0
    %v198 = vadd.f32 %v69, %v197
    %v199 = vpop.f32.mrb[0].mxu0
    %200 = vdwg.mxu0
    %201 = vst [vmem:[#allocation2] sm:$0xff] %v163
    %202 = vst [vmem:[#allocation2 + $0x8] sm:$0xff] %v168
    %203 = vst [vmem:[#allocation2 + $0x10] sm:$0xff] %v173
    %204 = vst [vmem:[#allocation2 + $0x18] sm:$0xff] %v178
    %205 = vst [vmem:[#allocation2 + $0x20] sm:$0xff] %v183
    %206 = vst [vmem:[#allocation2 + $0x28] sm:$0xff] %v188
    %207 = vst [vmem:[#allocation2 + $0x30] sm:$0xff] %v193
    %208 = vst [vmem:[#allocation2 + $0x38] sm:$0xff] %v198
    %v209 = vld [vmem:[#allocation3] sm:$0xff]
    %v210 = vld [vmem:[#allocation3 + $0x8] sm:$0xff]
    %v211 = vld [vmem:[#allocation3 + $0x10] sm:$0xff]
    %v212 = vld [vmem:[#allocation3 + $0x18] sm:$0xff]
    %v213 = vld [vmem:[#allocation3 + $0x20] sm:$0xff]
    %v214 = vld [vmem:[#allocation3 + $0x28] sm:$0xff]
    %v215 = vld [vmem:[#allocation3 + $0x30] sm:$0xff]
    %v216 = vld [vmem:[#allocation3 + $0x38] sm:$0xff]
    %v217 = vld [vmem:[#allocation3 + $0x40] sm:$0xff]
    %v218 = vld [vmem:[#allocation3 + $0x48] sm:$0xff]
    %v219 = vld [vmem:[#allocation3 + $0x50] sm:$0xff]
    %v220 = vld [vmem:[#allocation3 + $0x58] sm:$0xff]
    %v221 = vld [vmem:[#allocation3 + $0x60] sm:$0xff]
    %v222 = vld [vmem:[#allocation3 + $0x68] sm:$0xff]
    %v223 = vld [vmem:[#allocation3 + $0x70] sm:$0xff]
    %v224 = vld [vmem:[#allocation3 + $0x78] sm:$0xff]
    %v225 = vld [vmem:[#allocation2] sm:$0xff]
    %v226 = vtanh.pop %v225
    %v227 = vld [vmem:[#allocation2 + $0x8] sm:$0xff]
    %228 = vmatprep.subr.mxu0 0.0
    %229 = vmatpush1.msra.mxu0 %v209
    %230 = vmatprep.subr.mxu0 0.0
    %231 = vmatpush1.msra.mxu0 %v210
    %232 = vmatprep.subr.mxu0 0.0
    %233 = vmatpush1.msra.mxu0 %v211
    %234 = vmatprep.subr.mxu0 0.0
    %235 = vmatpush1.msra.mxu0 %v212
    %236 = vmatprep.subr.mxu0 0.0
    %237 = vmatpush1.msra.mxu0 %v213
    %238 = vmatprep.subr.mxu0 0.0
    %239 = vmatpush1.msra.mxu0 %v214
    %240 = vmatprep.subr.mxu0 0.0
    %241 = vmatpush1.msra.mxu0 %v215
    %242 = vmatprep.subr.mxu0 0.0
    %243 = vmatpush1.msra.mxu0 %v216
    %244 = vmatprep.subr.mxu0 0.0
    %245 = vmatpush1.msra.mxu0 %v217
    %246 = vmatprep.subr.mxu0 0.0
    %247 = vmatpush1.msra.mxu0 %v218
    %248 = vmatprep.subr.mxu0 0.0
    %249 = vmatpush1.msra.mxu0 %v219
    %250 = vmatprep.subr.mxu0 0.0
    %251 = vmatpush1.msra.mxu0 %v220
    %252 = vmatprep.subr.mxu0 0.0
    %253 = vmatpush1.msra.mxu0 %v221
    %254 = vmatprep.subr.mxu0 0.0
    %255 = vmatpush1.msra.mxu0 %v222
    %256 = vmatprep.subr.mxu0 0.0
    %257 = vmatpush1.msra.mxu0 %v223
    %258 = vmatprep.subr.mxu0 0.0
    %259 = vmatpush1.msra.mxu0 %v224
    %260 = vmatprep.subr.mxu0 0.0
    %261 = vmatpush1.msra.mxu0 0.0
    %262 = vmatprep.subr.mxu0 0.0
    %263 = vmatpush1.msra.mxu0 0.0
    %264 = vmatprep.subr.mxu0 0.0
    %265 = vmatpush1.msra.mxu0 0.0
    %266 = vmatprep.subr.mxu0 0.0
    %267 = vmatpush1.msra.mxu0 0.0
    %268 = vmatprep.subr.mxu0 0.0
    %269 = vmatpush1.msra.mxu0 0.0
    %270 = vmatprep.subr.mxu0 0.0
    %271 = vmatpush1.msra.mxu0 0.0
    %272 = vmatprep.subr.mxu0 0.0
    %273 = vmatpush1.msra.mxu0 0.0
    %274 = vmatprep.subr.mxu0 0.0
    %275 = vmatpush1.msra.mxu0 0.0
    %276 = vmatprep.subr.mxu0 0.0
    %277 = vmatpush1.msra.mxu0 0.0
    %278 = vmatprep.subr.mxu0 0.0
    %279 = vmatpush1.msra.mxu0 0.0
    %280 = vmatprep.subr.mxu0 0.0
    %281 = vmatpush1.msra.mxu0 0.0
    %282 = vmatprep.subr.mxu0 0.0
    %283 = vmatpush1.msra.mxu0 0.0
    %284 = vmatprep.subr.mxu0 0.0
    %285 = vmatpush1.msra.mxu0 0.0
    %286 = vmatprep.subr.mxu0 0.0
    %287 = vmatpush1.msra.mxu0 0.0
    %288 = vmatprep.subr.mxu0 0.0
    %289 = vmatpush1.msra.mxu0 0.0
    %290 = vmatprep.subr.mxu0 0.0
    %291 = vmatpush1.msra.mxu0 0.0
    %292 = vmatprep.mubr.f32.mxu0 0.0
    %293 = vmatmul.mubr.f32.gmra.mrb[0].mxu0 %v226
    %v294 = vpop.f32.mrb[0].mxu0
    %v295 = vadd.f32 0.0, %v294
    %v296 = vpop.f32.mrb[0].mxu0
    %297 = vdwg.mxu0
    %v298 = vadd.f32 %v227, %v295
    %v299 = vtanh.pop %v298
    %v300 = vld [vmem:[#allocation2 + $0x10] sm:$0xff]
    %301 = vmatprep.subr.mxu0 0.0
    %302 = vmatpush1.msra.mxu0 %v209
    %303 = vmatprep.subr.mxu0 0.0
    %304 = vmatpush1.msra.mxu0 %v210
    %305 = vmatprep.subr.mxu0 0.0
    %306 = vmatpush1.msra.mxu0 %v211
    %307 = vmatprep.subr.mxu0 0.0
    %308 = vmatpush1.msra.mxu0 %v212
    %309 = vmatprep.subr.mxu0 0.0
    %310 = vmatpush1.msra.mxu0 %v213
    %311 = vmatprep.subr.mxu0 0.0
    %312 = vmatpush1.msra.mxu0 %v214
    %313 = vmatprep.subr.mxu0 0.0
    %314 = vmatpush1.msra.mxu0 %v215
    %315 = vmatprep.subr.mxu0 0.0
    %316 = vmatpush1.msra.mxu0 %v216
    %317 = vmatprep.subr.mxu0 0.0
    %318 = vmatpush1.msra.mxu0 %v217
    %319 = vmatprep.subr.mxu0 0.0
    %320 = vmatpush1.msra.mxu0 %v218
    %321 = vmatprep.subr.mxu0 0.0
    %322 = vmatpush1.msra.mxu0 %v219
    %323 = vmatprep.subr.mxu0 0.0
    %324 = vmatpush1.msra.mxu0 %v220
    %325 = vmatprep.subr.mxu0 0.0
    %326 = vmatpush1.msra.mxu0 %v221
    %327 = vmatprep.subr.mxu0 0.0
    %328 = vmatpush1.msra.mxu0 %v222
    %329 = vmatprep.subr.mxu0 0.0
    %330 = vmatpush1.msra.mxu0 %v223
    %331 = vmatprep.subr.mxu0 0.0
    %332 = vmatpush1.msra.mxu0 %v224
    %333 = vmatprep.subr.mxu0 0.0
    %334 = vmatpush1.msra.mxu0 0.0
    %335 = vmatprep.subr.mxu0 0.0
    %336 = vmatpush1.msra.mxu0 0.0
    %337 = vmatprep.subr.mxu0 0.0
    %338 = vmatpush1.msra.mxu0 0.0
    %339 = vmatprep.subr.mxu0 0.0
    %340 = vmatpush1.msra.mxu0 0.0
    %341 = vmatprep.subr.mxu0 0.0
    %342 = vmatpush1.msra.mxu0 0.0
    %343 = vmatprep.subr.mxu0 0.0
    %344 = vmatpush1.msra.mxu0 0.0
    %345 = vmatprep.subr.mxu0 0.0
    %346 = vmatpush1.msra.mxu0 0.0
    %347 = vmatprep.subr.mxu0 0.0
    %348 = vmatpush1.msra.mxu0 0.0
    %349 = vmatprep.subr.mxu0 0.0
    %350 = vmatpush1.msra.mxu0 0.0
    %351 = vmatprep.subr.mxu0 0.0
    %352 = vmatpush1.msra.mxu0 0.0
    %353 = vmatprep.subr.mxu0 0.0
    %354 = vmatpush1.msra.mxu0 0.0
    %355 = vmatprep.subr.mxu0 0.0
    %356 = vmatpush1.msra.mxu0 0.0
    %357 = vmatprep.subr.mxu0 0.0
    %358 = vmatpush1.msra.mxu0 0.0
    %359 = vmatprep.subr.mxu0 0.0
    %360 = vmatpush1.msra.mxu0 0.0
    %361 = vmatprep.subr.mxu0 0.0
    %362 = vmatpush1.msra.mxu0 0.0
    %363 = vmatprep.subr.mxu0 0.0
    %364 = vmatpush1.msra.mxu0 0.0
    %365 = vmatprep.mubr.f32.mxu0 0.0
    %366 = vmatmul.mubr.f32.gmra.mrb[0].mxu0 %v299
    %v367 = vpop.f32.mrb[0].mxu0
    %v368 = vadd.f32 0.0, %v367
    %v369 = vpop.f32.mrb[0].mxu0
    %370 = vdwg.mxu0
    %v371 = vadd.f32 %v300, %v368
    %v372 = vtanh.pop %v371
    %v373 = vld [vmem:[#allocation2 + $0x18] sm:$0xff]
    %374 = vmatprep.subr.mxu0 0.0
    %375 = vmatpush1.msra.mxu0 %v209
    %376 = vmatprep.subr.mxu0 0.0
    %377 = vmatpush1.msra.mxu0 %v210
    %378 = vmatprep.subr.mxu0 0.0
    %379 = vmatpush1.msra.mxu0 %v211
    %380 = vmatprep.subr.mxu0 0.0
    %381 = vmatpush1.msra.mxu0 %v212
    %382 = vmatprep.subr.mxu0 0.0
    %383 = vmatpush1.msra.mxu0 %v213
    %384 = vmatprep.subr.mxu0 0.0
    %385 = vmatpush1.msra.mxu0 %v214
    %386 = vmatprep.subr.mxu0 0.0
    %387 = vmatpush1.msra.mxu0 %v215
    %388 = vmatprep.subr.mxu0 0.0
    %389 = vmatpush1.msra.mxu0 %v216
    %390 = vmatprep.subr.mxu0 0.0
    %391 = vmatpush1.msra.mxu0 %v217
    %392 = vmatprep.subr.mxu0 0.0
    %393 = vmatpush1.msra.mxu0 %v218
    %394 = vmatprep.subr.mxu0 0.0
    %395 = vmatpush1.msra.mxu0 %v219
    %396 = vmatprep.subr.mxu0 0.0
    %397 = vmatpush1.msra.mxu0 %v220
    %398 = vmatprep.subr.mxu0 0.0
    %399 = vmatpush1.msra.mxu0 %v221
    %400 = vmatprep.subr.mxu0 0.0
    %401 = vmatpush1.msra.mxu0 %v222
    %402 = vmatprep.subr.mxu0 0.0
    %403 = vmatpush1.msra.mxu0 %v223
    %404 = vmatprep.subr.mxu0 0.0
    %405 = vmatpush1.msra.mxu0 %v224
    %406 = vmatprep.subr.mxu0 0.0
    %407 = vmatpush1.msra.mxu0 0.0
    %408 = vmatprep.subr.mxu0 0.0
    %409 = vmatpush1.msra.mxu0 0.0
    %410 = vmatprep.subr.mxu0 0.0
    %411 = vmatpush1.msra.mxu0 0.0
    %412 = vmatprep.subr.mxu0 0.0
    %413 = vmatpush1.msra.mxu0 0.0
    %414 = vmatprep.subr.mxu0 0.0
    %415 = vmatpush1.msra.mxu0 0.0
    %416 = vmatprep.subr.mxu0 0.0
    %417 = vmatpush1.msra.mxu0 0.0
    %418 = vmatprep.subr.mxu0 0.0
    %419 = vmatpush1.msra.mxu0 0.0
    %420 = vmatprep.subr.mxu0 0.0
    %421 = vmatpush1.msra.mxu0 0.0
    %422 = vmatprep.subr.mxu0 0.0
    %423 = vmatpush1.msra.mxu0 0.0
    %424 = vmatprep.subr.mxu0 0.0
    %425 = vmatpush1.msra.mxu0 0.0
    %426 = vmatprep.subr.mxu0 0.0
    %427 = vmatpush1.msra.mxu0 0.0
    %428 = vmatprep.subr.mxu0 0.0
    %429 = vmatpush1.msra.mxu0 0.0
    %430 = vmatprep.subr.mxu0 0.0
    %431 = vmatpush1.msra.mxu0 0.0
    %432 = vmatprep.subr.mxu0 0.0
    %433 = vmatpush1.msra.mxu0 0.0
    %434 = vmatprep.subr.mxu0 0.0
    %435 = vmatpush1.msra.mxu0 0.0
    %436 = vmatprep.subr.mxu0 0.0
    %437 = vmatpush1.msra.mxu0 0.0
    %438 = vmatprep.mubr.f32.mxu0 0.0
    %439 = vmatmul.mubr.f32.gmra.mrb[0].mxu0 %v372
    %v440 = vpop.f32.mrb[0].mxu0
    %v441 = vadd.f32 0.0, %v440
    %v442 = vpop.f32.mrb[0].mxu0
    %443 = vdwg.mxu0
    %v444 = vadd.f32 %v373, %v441
    %v445 = vtanh.pop %v444
    %v446 = vld [vmem:[#allocation2 + $0x20] sm:$0xff]
    %447 = vmatprep.subr.mxu0 0.0
    %448 = vmatpush1.msra.mxu0 %v209
    %449 = vmatprep.subr.mxu0 0.0
    %450 = vmatpush1.msra.mxu0 %v210
    %451 = vmatprep.subr.mxu0 0.0
    %452 = vmatpush1.msra.mxu0 %v211
    %453 = vmatprep.subr.mxu0 0.0
    %454 = vmatpush1.msra.mxu0 %v212
    %455 = vmatprep.subr.mxu0 0.0
    %456 = vmatpush1.msra.mxu0 %v213
    %457 = vmatprep.subr.mxu0 0.0
    %458 = vmatpush1.msra.mxu0 %v214
    %459 = vmatprep.subr.mxu0 0.0
    %460 = vmatpush1.msra.mxu0 %v215
    %461 = vmatprep.subr.mxu0 0.0
    %462 = vmatpush1.msra.mxu0 %v216
    %463 = vmatprep.subr.mxu0 0.0
    %464 = vmatpush1.msra.mxu0 %v217
    %465 = vmatprep.subr.mxu0 0.0
    %466 = vmatpush1.msra.mxu0 %v218
    %467 = vmatprep.subr.mxu0 0.0
    %468 = vmatpush1.msra.mxu0 %v219
    %469 = vmatprep.subr.mxu0 0.0
    %470 = vmatpush1.msra.mxu0 %v220
    %471 = vmatprep.subr.mxu0 0.0
    %472 = vmatpush1.msra.mxu0 %v221
    %473 = vmatprep.subr.mxu0 0.0
    %474 = vmatpush1.msra.mxu0 %v222
    %475 = vmatprep.subr.mxu0 0.0
    %476 = vmatpush1.msra.mxu0 %v223
    %477 = vmatprep.subr.mxu0 0.0
    %478 = vmatpush1.msra.mxu0 %v224
    %479 = vmatprep.subr.mxu0 0.0
    %480 = vmatpush1.msra.mxu0 0.0
    %481 = vmatprep.subr.mxu0 0.0
    %482 = vmatpush1.msra.mxu0 0.0
    %483 = vmatprep.subr.mxu0 0.0
    %484 = vmatpush1.msra.mxu0 0.0
    %485 = vmatprep.subr.mxu0 0.0
    %486 = vmatpush1.msra.mxu0 0.0
    %487 = vmatprep.subr.mxu0 0.0
    %488 = vmatpush1.msra.mxu0 0.0
    %489 = vmatprep.subr.mxu0 0.0
    %490 = vmatpush1.msra.mxu0 0.0
    %491 = vmatprep.subr.mxu0 0.0
    %492 = vmatpush1.msra.mxu0 0.0
    %493 = vmatprep.subr.mxu0 0.0
    %494 = vmatpush1.msra.mxu0 0.0
    %495 = vmatprep.subr.mxu0 0.0
    %496 = vmatpush1.msra.mxu0 0.0
    %497 = vmatprep.subr.mxu0 0.0
    %498 = vmatpush1.msra.mxu0 0.0
    %499 = vmatprep.subr.mxu0 0.0
    %500 = vmatpush1.msra.mxu0 0.0
    %501 = vmatprep.subr.mxu0 0.0
    %502 = vmatpush1.msra.mxu0 0.0
    %503 = vmatprep.subr.mxu0 0.0
    %504 = vmatpush1.msra.mxu0 0.0
    %505 = vmatprep.subr.mxu0 0.0
    %506 = vmatpush1.msra.mxu0 0.0
    %507 = vmatprep.subr.mxu0 0.0
    %508 = vmatpush1.msra.mxu0 0.0
    %509 = vmatprep.subr.mxu0 0.0
    %510 = vmatpush1.msra.mxu0 0.0
    %511 = vmatprep.mubr.f32.mxu0 0.0
    %512 = vmatmul.mubr.f32.gmra.mrb[0].mxu0 %v445
    %v513 = vpop.f32.mrb[0].mxu0
    %v514 = vadd.f32 0.0, %v513
    %v515 = vpop.f32.mrb[0].mxu0
    %516 = vdwg.mxu0
    %v517 = vadd.f32 %v446, %v514
    %v518 = vtanh.pop %v517
    %v519 = vld [vmem:[#allocation2 + $0x28] sm:$0xff]
    %520 = vmatprep.subr.mxu0 0.0
    %521 = vmatpush1.msra.mxu0 %v209
    %522 = vmatprep.subr.mxu0 0.0
    %523 = vmatpush1.msra.mxu0 %v210
    %524 = vmatprep.subr.mxu0 0.0
    %525 = vmatpush1.msra.mxu0 %v211
    %526 = vmatprep.subr.mxu0 0.0
    %527 = vmatpush1.msra.mxu0 %v212
    %528 = vmatprep.subr.mxu0 0.0
    %529 = vmatpush1.msra.mxu0 %v213
    %530 = vmatprep.subr.mxu0 0.0
    %531 = vmatpush1.msra.mxu0 %v214
    %532 = vmatprep.subr.mxu0 0.0
    %533 = vmatpush1.msra.mxu0 %v215
    %534 = vmatprep.subr.mxu0 0.0
    %535 = vmatpush1.msra.mxu0 %v216
    %536 = vmatprep.subr.mxu0 0.0
    %537 = vmatpush1.msra.mxu0 %v217
    %538 = vmatprep.subr.mxu0 0.0
    %539 = vmatpush1.msra.mxu0 %v218
    %540 = vmatprep.subr.mxu0 0.0
    %541 = vmatpush1.msra.mxu0 %v219
    %542 = vmatprep.subr.mxu0 0.0
    %543 = vmatpush1.msra.mxu0 %v220
    %544 = vmatprep.subr.mxu0 0.0
    %545 = vmatpush1.msra.mxu0 %v221
    %546 = vmatprep.subr.mxu0 0.0
    %547 = vmatpush1.msra.mxu0 %v222
    %548 = vmatprep.subr.mxu0 0.0
    %549 = vmatpush1.msra.mxu0 %v223
    %550 = vmatprep.subr.mxu0 0.0
    %551 = vmatpush1.msra.mxu0 %v224
    %552 = vmatprep.subr.mxu0 0.0
    %553 = vmatpush1.msra.mxu0 0.0
    %554 = vmatprep.subr.mxu0 0.0
    %555 = vmatpush1.msra.mxu0 0.0
    %556 = vmatprep.subr.mxu0 0.0
    %557 = vmatpush1.msra.mxu0 0.0
    %558 = vmatprep.subr.mxu0 0.0
    %559 = vmatpush1.msra.mxu0 0.0
    %560 = vmatprep.subr.mxu0 0.0
    %561 = vmatpush1.msra.mxu0 0.0
    %562 = vmatprep.subr.mxu0 0.0
    %563 = vmatpush1.msra.mxu0 0.0
    %564 = vmatprep.subr.mxu0 0.0
    %565 = vmatpush1.msra.mxu0 0.0
    %566 = vmatprep.subr.mxu0 0.0
    %567 = vmatpush1.msra.mxu0 0.0
    %568 = vmatprep.subr.mxu0 0.0
    %569 = vmatpush1.msra.mxu0 0.0
    %570 = vmatprep.subr.mxu0 0.0
    %571 = vmatpush1.msra.mxu0 0.0
    %572 = vmatprep.subr.mxu0 0.0
    %573 = vmatpush1.msra.mxu0 0.0
    %574 = vmatprep.subr.mxu0 0.0
    %575 = vmatpush1.msra.mxu0 0.0
    %576 = vmatprep.subr.mxu0 0.0
    %577 = vmatpush1.msra.mxu0 0.0
    %578 = vmatprep.subr.mxu0 0.0
    %579 = vmatpush1.msra.mxu0 0.0
    %580 = vmatprep.subr.mxu0 0.0
    %581 = vmatpush1.msra.mxu0 0.0
    %582 = vmatprep.subr.mxu0 0.0
    %583 = vmatpush1.msra.mxu0 0.0
    %584 = vmatprep.mubr.f32.mxu0 0.0
    %585 = vmatmul.mubr.f32.gmra.mrb[0].mxu0 %v518
    %v586 = vpop.f32.mrb[0].mxu0
    %v587 = vadd.f32 0.0, %v586
    %v588 = vpop.f32.mrb[0].mxu0
    %589 = vdwg.mxu0
    %v590 = vadd.f32 %v519, %v587
    %v591 = vtanh.pop %v590
    %v592 = vld [vmem:[#allocation2 + $0x30] sm:$0xff]
    %593 = vmatprep.subr.mxu0 0.0
    %594 = vmatpush1.msra.mxu0 %v209
    %595 = vmatprep.subr.mxu0 0.0
    %596 = vmatpush1.msra.mxu0 %v210
    %597 = vmatprep.subr.mxu0 0.0
    %598 = vmatpush1.msra.mxu0 %v211
    %599 = vmatprep.subr.mxu0 0.0
    %600 = vmatpush1.msra.mxu0 %v212
    %601 = vmatprep.subr.mxu0 0.0
    %602 = vmatpush1.msra.mxu0 %v213
    %603 = vmatprep.subr.mxu0 0.0
    %604 = vmatpush1.msra.mxu0 %v214
    %605 = vmatprep.subr.mxu0 0.0
    %606 = vmatpush1.msra.mxu0 %v215
    %607 = vmatprep.subr.mxu0 0.0
    %608 = vmatpush1.msra.mxu0 %v216
    %609 = vmatprep.subr.mxu0 0.0
    %610 = vmatpush1.msra.mxu0 %v217
    %611 = vmatprep.subr.mxu0 0.0
    %612 = vmatpush1.msra.mxu0 %v218
    %613 = vmatprep.subr.mxu0 0.0
    %614 = vmatpush1.msra.mxu0 %v219
    %615 = vmatprep.subr.mxu0 0.0
    %616 = vmatpush1.msra.mxu0 %v220
    %617 = vmatprep.subr.mxu0 0.0
    %618 = vmatpush1.msra.mxu0 %v221
    %619 = vmatprep.subr.mxu0 0.0
    %620 = vmatpush1.msra.mxu0 %v222
    %621 = vmatprep.subr.mxu0 0.0
    %622 = vmatpush1.msra.mxu0 %v223
    %623 = vmatprep.subr.mxu0 0.0
    %624 = vmatpush1.msra.mxu0 %v224
    %625 = vmatprep.subr.mxu0 0.0
    %626 = vmatpush1.msra.mxu0 0.0
    %627 = vmatprep.subr.mxu0 0.0
    %628 = vmatpush1.msra.mxu0 0.0
    %629 = vmatprep.subr.mxu0 0.0
    %630 = vmatpush1.msra.mxu0 0.0
    %631 = vmatprep.subr.mxu0 0.0
    %632 = vmatpush1.msra.mxu0 0.0
    %633 = vmatprep.subr.mxu0 0.0
    %634 = vmatpush1.msra.mxu0 0.0
    %635 = vmatprep.subr.mxu0 0.0
    %636 = vmatpush1.msra.mxu0 0.0
    %637 = vmatprep.subr.mxu0 0.0
    %638 = vmatpush1.msra.mxu0 0.0
    %639 = vmatprep.subr.mxu0 0.0
    %640 = vmatpush1.msra.mxu0 0.0
    %641 = vmatprep.subr.mxu0 0.0
    %642 = vmatpush1.msra.mxu0 0.0
    %643 = vmatprep.subr.mxu0 0.0
    %644 = vmatpush1.msra.mxu0 0.0
    %645 = vmatprep.subr.mxu0 0.0
    %646 = vmatpush1.msra.mxu0 0.0
    %647 = vmatprep.subr.mxu0 0.0
    %648 = vmatpush1.msra.mxu0 0.0
    %649 = vmatprep.subr.mxu0 0.0
    %650 = vmatpush1.msra.mxu0 0.0
    %651 = vmatprep.subr.mxu0 0.0
    %652 = vmatpush1.msra.mxu0 0.0
    %653 = vmatprep.subr.mxu0 0.0
    %654 = vmatpush1.msra.mxu0 0.0
    %655 = vmatprep.subr.mxu0 0.0
    %656 = vmatpush1.msra.mxu0 0.0
    %657 = vmatprep.mubr.f32.mxu0 0.0
    %658 = vmatmul.mubr.f32.gmra.mrb[0].mxu0 %v591
    %v659 = vpop.f32.mrb[0].mxu0
    %v660 = vadd.f32 0.0, %v659
    %v661 = vpop.f32.mrb[0].mxu0
    %662 = vdwg.mxu0
    %v663 = vadd.f32 %v592, %v660
    %v664 = vtanh.pop %v663
    %v665 = vld [vmem:[#allocation2 + $0x38] sm:$0xff]
    %666 = vmatprep.subr.mxu0 0.0
    %667 = vmatpush1.msra.mxu0 %v209
    %668 = vmatprep.subr.mxu0 0.0
    %669 = vmatpush1.msra.mxu0 %v210
    %670 = vmatprep.subr.mxu0 0.0
    %671 = vmatpush1.msra.mxu0 %v211
    %672 = vmatprep.subr.mxu0 0.0
    %673 = vmatpush1.msra.mxu0 %v212
    %674 = vmatprep.subr.mxu0 0.0
    %675 = vmatpush1.msra.mxu0 %v213
    %676 = vmatprep.subr.mxu0 0.0
    %677 = vmatpush1.msra.mxu0 %v214
    %678 = vmatprep.subr.mxu0 0.0
    %679 = vmatpush1.msra.mxu0 %v215
    %680 = vmatprep.subr.mxu0 0.0
    %681 = vmatpush1.msra.mxu0 %v216
    %682 = vmatprep.subr.mxu0 0.0
    %683 = vmatpush1.msra.mxu0 %v217
    %684 = vmatprep.subr.mxu0 0.0
    %685 = vmatpush1.msra.mxu0 %v218
    %686 = vmatprep.subr.mxu0 0.0
    %687 = vmatpush1.msra.mxu0 %v219
    %688 = vmatprep.subr.mxu0 0.0
    %689 = vmatpush1.msra.mxu0 %v220
    %690 = vmatprep.subr.mxu0 0.0
    %691 = vmatpush1.msra.mxu0 %v221
    %692 = vmatprep.subr.mxu0 0.0
    %693 = vmatpush1.msra.mxu0 %v222
    %694 = vmatprep.subr.mxu0 0.0
    %695 = vmatpush1.msra.mxu0 %v223
    %696 = vmatprep.subr.mxu0 0.0
    %697 = vmatpush1.msra.mxu0 %v224
    %698 = vmatprep.subr.mxu0 0.0
    %699 = vmatpush1.msra.mxu0 0.0
    %700 = vmatprep.subr.mxu0 0.0
    %701 = vmatpush1.msra.mxu0 0.0
    %702 = vmatprep.subr.mxu0 0.0
    %703 = vmatpush1.msra.mxu0 0.0
    %704 = vmatprep.subr.mxu0 0.0
    %705 = vmatpush1.msra.mxu0 0.0
    %706 = vmatprep.subr.mxu0 0.0
    %707 = vmatpush1.msra.mxu0 0.0
    %708 = vmatprep.subr.mxu0 0.0
    %709 = vmatpush1.msra.mxu0 0.0
    %710 = vmatprep.subr.mxu0 0.0
    %711 = vmatpush1.msra.mxu0 0.0
    %712 = vmatprep.subr.mxu0 0.0
    %713 = vmatpush1.msra.mxu0 0.0
    %714 = vmatprep.subr.mxu0 0.0
    %715 = vmatpush1.msra.mxu0 0.0
    %716 = vmatprep.subr.mxu0 0.0
    %717 = vmatpush1.msra.mxu0 0.0
    %718 = vmatprep.subr.mxu0 0.0
    %719 = vmatpush1.msra.mxu0 0.0
    %720 = vmatprep.subr.mxu0 0.0
    %721 = vmatpush1.msra.mxu0 0.0
    %722 = vmatprep.subr.mxu0 0.0
    %723 = vmatpush1.msra.mxu0 0.0
    %724 = vmatprep.subr.mxu0 0.0
    %725 = vmatpush1.msra.mxu0 0.0
    %726 = vmatprep.subr.mxu0 0.0
    %727 = vmatpush1.msra.mxu0 0.0
    %728 = vmatprep.subr.mxu0 0.0
    %729 = vmatpush1.msra.mxu0 0.0
    %730 = vmatprep.mubr.f32.mxu0 0.0
    %731 = vmatmul.mubr.f32.gmra.mrb[0].mxu0 %v664
    %v732 = vpop.f32.mrb[0].mxu0
    %v733 = vadd.f32 0.0, %v732
    %v734 = vpop.f32.mrb[0].mxu0
    %735 = vdwg.mxu0
    %v736 = vadd.f32 %v665, %v733
    %v737 = vtanh.pop %v736
    %v738 = vld [vmem:[#allocation6] sm:$0xff]
    %v739 = vld [vmem:[#allocation6 + $0x8] sm:$0xff]
    %v740 = vld [vmem:[#allocation6 + $0x10] sm:$0xff]
    %v741 = vld [vmem:[#allocation6 + $0x18] sm:$0xff]
    %v742 = vld [vmem:[#allocation6 + $0x20] sm:$0xff]
    %v743 = vld [vmem:[#allocation6 + $0x28] sm:$0xff]
    %v744 = vld [vmem:[#allocation6 + $0x30] sm:$0xff]
    %v745 = vld [vmem:[#allocation6 + $0x38] sm:$0xff]
    %v746 = vld [vmem:[#allocation6 + $0x40] sm:$0xff]
    %v747 = vld [vmem:[#allocation6 + $0x48] sm:$0xff]
    %v748 = vld [vmem:[#allocation6 + $0x50] sm:$0xff]
    %v749 = vld [vmem:[#allocation6 + $0x58] sm:$0xff]
    %v750 = vld [vmem:[#allocation6 + $0x60] sm:$0xff]
    %v751 = vld [vmem:[#allocation6 + $0x68] sm:$0xff]
    %v752 = vld [vmem:[#allocation6 + $0x70] sm:$0xff]
    %v753 = vld [vmem:[#allocation6 + $0x78] sm:$0xff]
    %v754 = vld [vmem:[%s5] sm:$0x1]
    %v756 = vlaneseq
    %v757 = vshrl.u32 %v756, 7
    %v758 = vsub.s32 0, %v757
    %v759 = vrot.slane %v754, %v758
    %761 = vmatprep.subr.mxu0 0.0
    %762 = vmatpush1.msra.mxu0 %v738
    %763 = vmatprep.subr.mxu0 0.0
    %764 = vmatpush1.msra.mxu0 %v739
    %765 = vmatprep.subr.mxu0 0.0
    %766 = vmatpush1.msra.mxu0 %v740
    %767 = vmatprep.subr.mxu0 0.0
    %768 = vmatpush1.msra.mxu0 %v741
    %769 = vmatprep.subr.mxu0 0.0
    %770 = vmatpush1.msra.mxu0 %v742
    %771 = vmatprep.subr.mxu0 0.0
    %772 = vmatpush1.msra.mxu0 %v743
    %773 = vmatprep.subr.mxu0 0.0
    %774 = vmatpush1.msra.mxu0 %v744
    %775 = vmatprep.subr.mxu0 0.0
    %776 = vmatpush1.msra.mxu0 %v745
    %777 = vmatprep.subr.mxu0 0.0
    %778 = vmatpush1.msra.mxu0 %v746
    %779 = vmatprep.subr.mxu0 0.0
    %780 = vmatpush1.msra.mxu0 %v747
    %781 = vmatprep.subr.mxu0 0.0
    %782 = vmatpush1.msra.mxu0 %v748
    %783 = vmatprep.subr.mxu0 0.0
    %784 = vmatpush1.msra.mxu0 %v749
    %785 = vmatprep.subr.mxu0 0.0
    %786 = vmatpush1.msra.mxu0 %v750
    %787 = vmatprep.subr.mxu0 0.0
    %788 = vmatpush1.msra.mxu0 %v751
    %789 = vmatprep.subr.mxu0 0.0
    %790 = vmatpush1.msra.mxu0 %v752
    %791 = vmatprep.subr.mxu0 0.0
    %792 = vmatpush1.msra.mxu0 %v753
    %793 = vmatprep.subr.mxu0 0.0
    %794 = vmatpush1.msra.mxu0 0.0
    %795 = vmatprep.subr.mxu0 0.0
    %796 = vmatpush1.msra.mxu0 0.0
    %797 = vmatprep.subr.mxu0 0.0
    %798 = vmatpush1.msra.mxu0 0.0
    %799 = vmatprep.subr.mxu0 0.0
    %800 = vmatpush1.msra.mxu0 0.0
    %801 = vmatprep.subr.mxu0 0.0
    %802 = vmatpush1.msra.mxu0 0.0
    %803 = vmatprep.subr.mxu0 0.0
    %804 = vmatpush1.msra.mxu0 0.0
    %805 = vmatprep.subr.mxu0 0.0
    %806 = vmatpush1.msra.mxu0 0.0
    %807 = vmatprep.subr.mxu0 0.0
    %808 = vmatpush1.msra.mxu0 0.0
    %809 = vmatprep.subr.mxu0 0.0
    %810 = vmatpush1.msra.mxu0 0.0
    %811 = vmatprep.subr.mxu0 0.0
    %812 = vmatpush1.msra.mxu0 0.0
    %813 = vmatprep.subr.mxu0 0.0
    %814 = vmatpush1.msra.mxu0 0.0
    %815 = vmatprep.subr.mxu0 0.0
    %816 = vmatpush1.msra.mxu0 0.0
    %817 = vmatprep.subr.mxu0 0.0
    %818 = vmatpush1.msra.mxu0 0.0
    %819 = vmatprep.subr.mxu0 0.0
    %820 = vmatpush1.msra.mxu0 0.0
    %821 = vmatprep.subr.mxu0 0.0
    %822 = vmatpush1.msra.mxu0 0.0
    %823 = vmatprep.subr.mxu0 0.0
    %824 = vmatpush1.msra.mxu0 0.0
    %825 = vmatprep.mubr.f32.mxu0 0.0
    %826 = vmatmul.mubr.f32.gmra.mrb[0].mxu0 %v737
    %v827 = vpop.f32.mrb[0].mxu0
    %v828 = vadd.f32 %v759, %v827
    %v829 = vpop.f32.mrb[0].mxu0
    %830 = vdwg.mxu0
    %831 = vst [vmem:[#allocation8] sm:$0xff] %v828
    // Predicated region
    $region34: #{tpu_custom_call.1} parent=1 // pred_check
      _
    $region35: #{tpu_custom_call.1} parent=1 // pred_check_branch
      %833 = sbr.rel (0) target = $region37
    $region36: #{tpu_custom_call.1} parent=1 // pred_region
      %s835 = ssub.s32 128, 128
      %836 = vsyncadd [#allocation5], %s835
      %s838 = sshll.u32 [#allocation8], 4
      %s839 = int_to_ptr.vmem [resolvable:$true] %s838
      %841 = dma.vmem_to_hbm [thread:$0]  %s839, 128, %s6, [#allocation5]
    $region37: #{tpu_custom_call.1} parent=1 // pred_fallthru
      _
    // Predicated region
    $region38: #{tpu_custom_call.1} parent=1 // pred_check
      _
    $region39: #{tpu_custom_call.1} parent=1 // pred_check_branch
      %843 = sbr.rel (0) target = $region41
    $region40: #{tpu_custom_call.1} parent=1 // pred_region
      %844 = dma.done [#allocation5], 128
    $region41: #{tpu_custom_call.1} parent=1 // pred_fallthru
      _
    %845 = vsyncpa [#allocation4], 1
    %846 = vsyncpa [#allocation7], 1
    %847 = vsyncpa [#allocation5], 1

</llo_original>
